<compile_context>
chip_gen: v5e
topology: v5e:2x2
jax: 0.10.0
libtpu: 0.0.40
codegen_flags: <defaults>
</compile_context>

<pallas_src>
import math

import jax
import jax.numpy as jnp
from jax import lax
from jax.experimental import pallas as pl
from jax.experimental.pallas import tpu as pltpu


def _round_up(x, m):
    return ((x + m - 1) // m) * m


def cclinear_kernel(x_ref, vw_ref, cm_ref, b_ref, o_ref, acc_ref, corr_ref):
    """Computes one (tm, tn) output tile; grid axis 2 (K = in_features) is the reduction."""
    k = pl.program_id(2)

    @pl.when(k == 0)
    def _init():
        acc_ref[...] = jnp.zeros_like(acc_ref)
        corr_ref[...] = jnp.zeros_like(corr_ref)

    x = x_ref[...]                                          # (tm, tk)

    # x @ v_weight.T with the contraction expressed in dimension_numbers
    # (no explicit .T / XLU transpose of the weight tile).
    acc_ref[...] += lax.dot_general(
        x, vw_ref[...],                                     # (tm, tk), (tn, tk)
        dimension_numbers=(((1,), (1,)), ((), ())),
        preferred_element_type=jnp.float32)                 # -> (tm, tn)

    # Rank-1 centering correction: (x @ col_means.T), accumulated over K.
    corr_ref[...] += jnp.sum(
        x.astype(jnp.float32) * cm_ref[...], axis=-1, keepdims=True)  # (tm, 1)

    @pl.when(k == pl.num_programs(2) - 1)
    def _finalize():
        out = acc_ref[...] - corr_ref[...] + b_ref[...]     # bias added once, at the end
        o_ref[...] = out.astype(o_ref.dtype)


def cclinear_forward(x, v_weight, v_bias=None, *, tm=256, tn=256, tk=512):
    """out = x @ (v_weight - mean(v_weight, axis=0)).T + (v_bias - mean(v_bias))."""
    orig_shape = x.shape
    in_features = orig_shape[-1]
    out_features = v_weight.shape[0]
    x2 = x.reshape(-1, in_features)
    M = x2.shape[0]

    # Centering statistics reduce over the FULL out_features axis, so they
    # cannot be computed inside an N-tile -> hoist to the wrapper (tiny ops).
    col_means = jnp.mean(v_weight, axis=0, keepdims=True).astype(jnp.float32)  # (1, in)
    if v_bias is None:
        b_centered = jnp.zeros((1, out_features), jnp.float32)
    else:
        vb = v_bias.reshape(-1).astype(jnp.float32)
        b_centered = (vb - jnp.mean(vb)).reshape(1, out_features)

    # Tile sizes: keep (8, 128) alignment; shrink to the (padded) problem if small.
    tm = min(tm, _round_up(M, 8))
    tn = min(tn, _round_up(out_features, 128))
    tk = min(tk, _round_up(in_features, 128))

    Mp = _round_up(M, tm)
    Np = _round_up(out_features, tn)
    Kp = _round_up(in_features, tk)

    xp = jnp.pad(x2, ((0, Mp - M), (0, Kp - in_features)))
    vwp = jnp.pad(v_weight, ((0, Np - out_features), (0, Kp - in_features)))
    col_means_p = jnp.pad(col_means, ((0, 0), (0, Kp - in_features)))
    bias_p = jnp.pad(b_centered, ((0, 0), (0, Np - out_features)))

    grid = (Mp // tm, Np // tn, Kp // tk)

    itemsize = jnp.dtype(x.dtype).itemsize
    vmem_bytes = int(1.5 * (
        2 * ((tm * tk + tn * tk) * itemsize + (tk + tn) * 4)   # double-buffered inputs
        + 2 * tm * tn * itemsize                               # double-buffered output
        + tm * tn * 4 + tm * 128 * 4))                         # acc + corr scratch
    vmem_bytes = max(vmem_bytes, 32 * 1024 * 1024)

    out = pl.pallas_call(
        cclinear_kernel,
        out_shape=jax.ShapeDtypeStruct((Mp, Np), x.dtype),
        grid_spec=pltpu.PrefetchScalarGridSpec(
            num_scalar_prefetch=0,
            grid=grid,
            in_specs=[
                pl.BlockSpec((tm, tk), lambda i, j, k: (i, k)),   # x
                pl.BlockSpec((tn, tk), lambda i, j, k: (j, k)),   # v_weight (out, in)
                pl.BlockSpec((1, tk), lambda i, j, k: (0, k)),    # col_means
                pl.BlockSpec((1, tn), lambda i, j, k: (0, j)),    # centered bias
            ],
            out_specs=pl.BlockSpec((tm, tn), lambda i, j, k: (i, j)),
            scratch_shapes=[
                pltpu.VMEM((tm, tn), jnp.float32),   # matmul accumulator
                pltpu.VMEM((tm, 1), jnp.float32),    # rank-1 correction accumulator
            ],
        ),
        compiler_params=pltpu.CompilerParams(
            dimension_semantics=("parallel", "parallel", "arbitrary"),
            vmem_limit_bytes=vmem_bytes),
    )(xp, vwp, col_means_p, bias_p)

    out = out[:M, :out_features]
    return out.reshape(*orig_shape[:-1], out_features)


def init_params(key, in_features, out_features, dtype=jnp.float32):
    """Deterministic init mirroring the PyTorch module's reset_parameters."""
    kw, kb = jax.random.split(key)
    # kaiming_uniform_(a=sqrt(5)) on an (out, in) tensor -> bound = sqrt(1 / fan_in)
    fan_in = in_features
    w_bound = math.sqrt(1.0 / fan_in)
    v_weight = jax.random.uniform(
        kw, (out_features, in_features), dtype=dtype, minval=-w_bound, maxval=w_bound)
    b_bound = 1.0 / math.sqrt(fan_in)
    v_bias = jax.random.uniform(
        kb, (out_features,), dtype=dtype, minval=-b_bound, maxval=b_bound)
    return v_weight, v_bias


def _reference(x, v_weight, v_bias):
    w = v_weight - jnp.mean(v_weight, axis=0, keepdims=True)
    b = v_bias - jnp.mean(v_bias)
    return jnp.einsum("...i,oi->...o", x, w) + b


if __name__ == "__main__":
    key = jax.random.PRNGKey(0)

    # Primary demo: (batch, seq, in_features) -> (batch, seq, out_features)
    batch, seq, in_features, out_features = 2, 8, 32, 48
    kx, kp, k2 = jax.random.split(key, 3)
    x = jax.random.normal(kx, (batch, seq, in_features), dtype=jnp.float32)
    v_weight, v_bias = init_params(kp, in_features, out_features)

    out = jax.block_until_ready(cclinear_forward(x, v_weight, v_bias))
    ref = _reference(x, v_weight, v_bias)
    assert out.shape == (batch, seq, out_features)
    assert jnp.allclose(out, ref, atol=1e-5, rtol=1e-5)

    # Second small check exercising a multi-tile (2, 2, 2) grid and the K-accumulator.
    kx2, kp2 = jax.random.split(k2)
    x_b = jax.random.normal(kx2, (16, 256), dtype=jnp.float32)
    vw_b, vb_b = init_params(kp2, 256, 192)
    out_b = jax.block_until_ready(
        cclinear_forward(x_b, vw_b, vb_b, tm=8, tn=128, tk=128))
    ref_b = _reference(x_b, vw_b, vb_b)
    assert out_b.shape == (16, 192)
    assert jnp.allclose(out_b, ref_b, atol=1e-4, rtol=1e-4)

    print("KERNEL_OK")
</pallas_src>

<mosaic_0001>
module attributes {stable_mosaic.version = 11 : i64} {
  func.func @cclinear_kernel(%arg0: i32, %arg1: i32, %arg2: i32, %arg3: memref<16x128xf32, #tpu.memory_space<vmem>>, %arg4: memref<128x128xf32, #tpu.memory_space<vmem>>, %arg5: memref<1x128xf32, #tpu.memory_space<vmem>>, %arg6: memref<1x128xf32, #tpu.memory_space<vmem>>, %arg7: memref<16x128xf32, #tpu.memory_space<vmem>>, %arg8: memref<16x128xf32, #tpu.memory_space<vmem>>, %arg9: memref<16x1xf32, #tpu.memory_space<vmem>>) attributes {dimension_semantics = [#tpu.dimension_semantics<parallel>, #tpu.dimension_semantics<parallel>, #tpu.dimension_semantics<arbitrary>], iteration_bounds = array<i64: 1, 1, 1>, scalar_prefetch = 0 : i64, scratch_operands = 2 : i64, tpu.core_type = #tpu.core_type<tc>, window_params = [{transform_indices = @transform_0, window_bounds = array<i64: 16, 128>}, {transform_indices = @transform_1, window_bounds = array<i64: 128, 128>}, {transform_indices = @transform_2, window_bounds = array<i64: 1, 128>}, {transform_indices = @transform_3, window_bounds = array<i64: 1, 128>}, {transform_indices = @transform_4, window_bounds = array<i64: 16, 128>}]} {
    %c0_i32 = arith.constant 0 : i32
    %0 = arith.cmpi eq, %arg2, %c0_i32 : i32
    %1 = arith.extui %0 : i1 to i32
    %c0_i32_0 = arith.constant 0 : i32
    %2 = arith.cmpi ne, %1, %c0_i32_0 : i32
    scf.if %2 {
      %cst_17 = arith.constant 0.000000e+00 : f32
      %20 = vector.broadcast %cst_17 : f32 to vector<16x128xf32>
      %c0_18 = arith.constant 0 : index
      %c0_19 = arith.constant 0 : index
      %21 = vector.load %arg8[%c0_18, %c0_19] : memref<16x128xf32, #tpu.memory_space<vmem>>, vector<16x128xf32>
      tpu.vector_store %arg8[%c0_18, %c0_19], %20 {strides = array<i32>} : memref<16x128xf32, #tpu.memory_space<vmem>>, vector<16x128xf32>,
      %cst_20 = arith.constant 0.000000e+00 : f32
      %22 = vector.broadcast %cst_20 : f32 to vector<16x1xf32>
      %c0_21 = arith.constant 0 : index
      %c0_22 = arith.constant 0 : index
      %23 = vector.load %arg9[%c0_21, %c0_22] : memref<16x1xf32, #tpu.memory_space<vmem>>, vector<16x1xf32>
      tpu.vector_store %arg9[%c0_21, %c0_22], %22 {strides = array<i32>} : memref<16x1xf32, #tpu.memory_space<vmem>>, vector<16x1xf32>,
    } else {
    }
    %c0 = arith.constant 0 : index
    %c0_1 = arith.constant 0 : index
    %3 = vector.load %arg3[%c0, %c0_1] : memref<16x128xf32, #tpu.memory_space<vmem>>, vector<16x128xf32>
    %c0_2 = arith.constant 0 : index
    %c0_3 = arith.constant 0 : index
    %4 = vector.load %arg8[%c0_2, %c0_3] : memref<16x128xf32, #tpu.memory_space<vmem>>, vector<16x128xf32>
    %c0_4 = arith.constant 0 : index
    %c0_5 = arith.constant 0 : index
    %5 = vector.load %arg4[%c0_4, %c0_5] : memref<128x128xf32, #tpu.memory_space<vmem>>, vector<128x128xf32>
    %cst = arith.constant dense<0.000000e+00> : vector<16x128xf32>
    %6 = tpu.matmul %3, %5, %cst {dimension_numbers = #tpu.dot_dimension_numbers<[1], [1], [0], [0], [0, 0, 1, 0], [], []>} : vector<16x128xf32>, vector<128x128xf32>, vector<16x128xf32> -> vector<16x128xf32>
    %7 = arith.addf %4, %6 : vector<16x128xf32>
    %c0_6 = arith.constant 0 : index
    %c0_7 = arith.constant 0 : index
    %8 = vector.load %arg8[%c0_6, %c0_7] : memref<16x128xf32, #tpu.memory_space<vmem>>, vector<16x128xf32>
    tpu.vector_store %arg8[%c0_6, %c0_7], %7 {strides = array<i32>} : memref<16x128xf32, #tpu.memory_space<vmem>>, vector<16x128xf32>,
    %c0_8 = arith.constant 0 : index
    %c0_9 = arith.constant 0 : index
    %9 = vector.load %arg9[%c0_8, %c0_9] : memref<16x1xf32, #tpu.memory_space<vmem>>, vector<16x1xf32>
    %c0_10 = arith.constant 0 : index
    %c0_11 = arith.constant 0 : index
    %10 = vector.load %arg5[%c0_10, %c0_11] : memref<1x128xf32, #tpu.memory_space<vmem>>, vector<1x128xf32>
    %11 = vector.broadcast %10 : vector<1x128xf32> to vector<16x128xf32>
    %12 = arith.mulf %3, %11 : vector<16x128xf32>
    %cst_12 = arith.constant dense<0.000000e+00> : vector<16xf32>
    %13 = vector.multi_reduction <add>, %12, %cst_12 [1] : vector<16x128xf32> to vector<16xf32>
    %14 = vector.shape_cast %13 : vector<16xf32> to vector<16x1xf32>
    %15 = arith.addf %9, %14 : vector<16x1xf32>
    %c0_13 = arith.constant 0 : index
    %c0_14 = arith.constant 0 : index
    %16 = vector.load %arg9[%c0_13, %c0_14] : memref<16x1xf32, #tpu.memory_space<vmem>>, vector<16x1xf32>
    tpu.vector_store %arg9[%c0_13, %c0_14], %15 {strides = array<i32>} : memref<16x1xf32, #tpu.memory_space<vmem>>, vector<16x1xf32>,
    %c0_i32_15 = arith.constant 0 : i32
    %17 = arith.cmpi eq, %arg2, %c0_i32_15 : i32
    %18 = arith.extui %17 : i1 to i32
    %c0_i32_16 = arith.constant 0 : i32
    %19 = arith.cmpi ne, %18, %c0_i32_16 : i32
    scf.if %19 {
      %c0_17 = arith.constant 0 : index
      %c0_18 = arith.constant 0 : index
      %20 = vector.load %arg8[%c0_17, %c0_18] : memref<16x128xf32, #tpu.memory_space<vmem>>, vector<16x128xf32>
      %c0_19 = arith.constant 0 : index
      %c0_20 = arith.constant 0 : index
      %21 = vector.load %arg9[%c0_19, %c0_20] : memref<16x1xf32, #tpu.memory_space<vmem>>, vector<16x1xf32>
      %22 = vector.broadcast %21 : vector<16x1xf32> to vector<16x128xf32>
      %23 = arith.subf %20, %22 : vector<16x128xf32>
      %c0_21 = arith.constant 0 : index
      %c0_22 = arith.constant 0 : index
      %24 = vector.load %arg6[%c0_21, %c0_22] : memref<1x128xf32, #tpu.memory_space<vmem>>, vector<1x128xf32>
      %25 = vector.broadcast %24 : vector<1x128xf32> to vector<16x128xf32>
      %26 = arith.addf %23, %25 : vector<16x128xf32>
      %c0_23 = arith.constant 0 : index
      %c0_24 = arith.constant 0 : index
      %27 = vector.load %arg7[%c0_23, %c0_24] : memref<16x128xf32, #tpu.memory_space<vmem>>, vector<16x128xf32>
      tpu.vector_store %arg7[%c0_23, %c0_24], %26 {strides = array<i32>} : memref<16x128xf32, #tpu.memory_space<vmem>>, vector<16x128xf32>,
    } else {
    }
    return
  }
  func.func @transform_0(%arg0: i32, %arg1: i32, %arg2: i32) -> (i32, i32) {
    %c0_i32 = arith.constant 0 : i32
    return %arg0, %arg2 : i32, i32
  }
  func.func @transform_1(%arg0: i32, %arg1: i32, %arg2: i32) -> (i32, i32) {
    %c0_i32 = arith.constant 0 : i32
    return %arg1, %arg2 : i32, i32
  }
  func.func @transform_2(%arg0: i32, %arg1: i32, %arg2: i32) -> (i32, i32) {
    %c0_i32 = arith.constant 0 : i32
    %c0_i32_0 = arith.constant 0 : i32
    return %c0_i32, %arg2 : i32, i32
  }
  func.func @transform_3(%arg0: i32, %arg1: i32, %arg2: i32) -> (i32, i32) {
    %c0_i32 = arith.constant 0 : i32
    %c0_i32_0 = arith.constant 0 : i32
    return %c0_i32, %arg1 : i32, i32
  }
  func.func @transform_4(%arg0: i32, %arg1: i32, %arg2: i32) -> (i32, i32) {
    %c0_i32 = arith.constant 0 : i32
    return %arg0, %arg1 : i32, i32
  }
}

</mosaic_0001>

<llo_original>
// kernel: tpu_custom_call.1
$region0: #{tpu_custom_call.1}
  #allocation0 [shape = 'u32[]', space=smem, size = 0x4, offset = 0x4, fixed_abs, tag = 'smem constant byte address 0x4 - core index']
  #allocation1 [shape = 'u32[72,128]{1,0:T(1,128)}', space=vmem, size = 0x9000, scoped, tag = 'internal scratch']
  #allocation2 [shape = 'f32[16,128]{1,0:T(8,128)}', space=vmem, size = 0x2000, scoped, tag = 'scratch operand']
  #allocation3 [shape = 'f32[16,1]{1,0:T(8,128)}', space=vmem, size = 0x2000, scoped, tag = 'scratch operand']
  %s0 = inlined_call_operand.hbm [shape: f32[16,128], index: 0, kind: input, shape index: {}]
  %s1 = inlined_call_operand.hbm [shape: f32[128,128], index: 1, kind: input, shape index: {}]
  %s2 = inlined_call_operand.vmem [shape: f32[1,128], index: 2, kind: input, shape index: {}]
  %s3 = inlined_call_operand.vmem [shape: f32[1,128], index: 3, kind: input, shape index: {}]
  %s4 = inlined_call_operand.hbm [shape: f32[16,128], index: 4, kind: output, shape index: {}]
  %s5 = sld [smem:[#allocation0]]
  $region42: #{tpu_custom_call.1} parent=0
    _
  %s7 = ssub.s32 1, %s5
  %s8 = scalar_select 0, %s7, %s5
  $region1: #{tpu_custom_call.1} parent=0
    #allocation4 [shape = 'u8[8192]{0}', space=vmem, size = 0x2000, scoped, tag = 'input window, operand 0, single buffered']
    #allocation5 [shape = 's32[1]{0}', space=sflag, size = 0x4, scoped, tag = 'scoped memory for tpu_custom_call.1']
    #allocation6 [shape = 's32[1]{0}', space=sflag, size = 0x4, scoped, tag = 'scoped memory for tpu_custom_call.1']
    #allocation7 [shape = 'u8[65536]{0}', space=vmem, size = 0x10000, scoped, tag = 'input window, operand 1, single buffered']
    #allocation8 [shape = 's32[1]{0}', space=sflag, size = 0x4, scoped, tag = 'scoped memory for tpu_custom_call.1']
    #allocation9 [shape = 'u8[8192]{0}', space=vmem, size = 0x2000, scoped, tag = 'output window, operand 0, single buffered']
    %9 = vsyncpa [#allocation5], 0
    %10 = vsyncpa [#allocation8], 0
    %11 = vsyncpa [#allocation6], 0
    // Predicated region
    $region2: #{tpu_custom_call.1} parent=1 // pred_check
      _
    $region3: #{tpu_custom_call.1} parent=1 // pred_check_branch
      %13 = sbr.rel (0) target = $region5
    $region4: #{tpu_custom_call.1} parent=1 // pred_region
      %15 = vsyncadd [#allocation5], 0
      %s16 = sshll.u32 %s0, 4
      %s17 = int_to_ptr.hbm [resolvable:$true] %s16
      %s18 = sshll.u32 [#allocation4], 4
      %s19 = int_to_ptr.vmem [resolvable:$true] %s18
      %24 = dma.hbm_to_vmem [thread:$0]  %s17, 256, %s19, [#allocation5], 128, 128, 8
    $region5: #{tpu_custom_call.1} parent=1 // pred_fallthru
      _
    // Predicated region
    $region6: #{tpu_custom_call.1} parent=1 // pred_check
      _
    $region7: #{tpu_custom_call.1} parent=1 // pred_check_branch
      %26 = sbr.rel (0) target = $region9
    $region8: #{tpu_custom_call.1} parent=1 // pred_region
      %28 = vsyncadd [#allocation8], 0
      %s29 = sshll.u32 %s1, 4
      %s30 = int_to_ptr.hbm [resolvable:$true] %s29
      %s31 = sshll.u32 [#allocation7], 4
      %s32 = int_to_ptr.vmem [resolvable:$true] %s31
      %37 = dma.hbm_to_vmem [thread:$0]  %s30, 2048, %s32, [#allocation8], 128, 128, 8
    $region9: #{tpu_custom_call.1} parent=1 // pred_fallthru
      _
    // Predicated region
    $region10: #{tpu_custom_call.1} parent=1 // pred_check
      _
    $region11: #{tpu_custom_call.1} parent=1 // pred_check_branch
      %39 = sbr.rel (0) target = $region13
    $region12: #{tpu_custom_call.1} parent=1 // pred_region
      _
    $region13: #{tpu_custom_call.1} parent=1 // pred_fallthru
      _
    // Predicated region
    $region14: #{tpu_custom_call.1} parent=1 // pred_check
      _
    $region15: #{tpu_custom_call.1} parent=1 // pred_check_branch
      %41 = sbr.rel (0) target = $region17
    $region16: #{tpu_custom_call.1} parent=1 // pred_region
      _
    $region17: #{tpu_custom_call.1} parent=1 // pred_fallthru
      _
    // Predicated region
    $region18: #{tpu_custom_call.1} parent=1 // pred_check
      _
    $region19: #{tpu_custom_call.1} parent=1 // pred_check_branch
      %43 = sbr.rel (0) target = $region21
    $region20: #{tpu_custom_call.1} parent=1 // pred_region
      %45 = dma.done [#allocation5], 256
    $region21: #{tpu_custom_call.1} parent=1 // pred_fallthru
      _
    // Predicated region
    $region22: #{tpu_custom_call.1} parent=1 // pred_check
      _
    $region23: #{tpu_custom_call.1} parent=1 // pred_check_branch
      %47 = sbr.rel (0) target = $region25
    $region24: #{tpu_custom_call.1} parent=1 // pred_region
      %49 = dma.done [#allocation8], 2048
    $region25: #{tpu_custom_call.1} parent=1 // pred_fallthru
      _
    %p50 = scmp.eq.s32.totalorder 0, 0
    // Predicated region
    $region26: #{tpu_custom_call.1} parent=1 // pred_check
      %p51 = pneg %p50
    $region27: #{tpu_custom_call.1} parent=1 // pred_check_branch
      %53 = sbr.rel (%p51) target = $region29
    $region28: #{tpu_custom_call.1} parent=1 // pred_region
      %54 = vst [vmem:[#allocation2] sm:$0xff] 0.0
      %55 = vst [vmem:[#allocation2 + $0x8] sm:$0xff] 0.0
      %vm56 = vcmask 7168
      %57 = vst.msk [vmem:[#allocation3] sm:$0xff] %vm56, 0.0
      %58 = vst.msk [vmem:[#allocation3 + $0x8] sm:$0xff] %vm56, 0.0
    $region29: #{tpu_custom_call.1} parent=1 // pred_fallthru
      _
    %v59 = vld [vmem:[#allocation4] sm:$0xff]
    %v60 = vld [vmem:[#allocation4 + $0x8] sm:$0xff]
    %v61 = vld [vmem:[#allocation2] sm:$0xff]
    %v62 = vld [vmem:[#allocation2 + $0x8] sm:$0xff]
    %v63 = vld [vmem:[#allocation7] sm:$0xff]
    %v64 = vld [vmem:[#allocation7 + $0x8] sm:$0xff]
    %v65 = vld [vmem:[#allocation7 + $0x10] sm:$0xff]
    %v66 = vld [vmem:[#allocation7 + $0x18] sm:$0xff]
    %v67 = vld [vmem:[#allocation7 + $0x20] sm:$0xff]
    %v68 = vld [vmem:[#allocation7 + $0x28] sm:$0xff]
    %v69 = vld [vmem:[#allocation7 + $0x30] sm:$0xff]
    %v70 = vld [vmem:[#allocation7 + $0x38] sm:$0xff]
    %v71 = vld [vmem:[#allocation7 + $0x40] sm:$0xff]
    %v72 = vld [vmem:[#allocation7 + $0x48] sm:$0xff]
    %v73 = vld [vmem:[#allocation7 + $0x50] sm:$0xff]
    %v74 = vld [vmem:[#allocation7 + $0x58] sm:$0xff]
    %v75 = vld [vmem:[#allocation7 + $0x60] sm:$0xff]
    %v76 = vld [vmem:[#allocation7 + $0x68] sm:$0xff]
    %v77 = vld [vmem:[#allocation7 + $0x70] sm:$0xff]
    %v78 = vld [vmem:[#allocation7 + $0x78] sm:$0xff]
    %79 = vmatpush.xpose.msra.mxu0 %v78
    %80 = vmatpush.xpose.msra.mxu0 %v77
    %81 = vmatpush.xpose.msra.mxu0 %v76
    %82 = vmatpush.xpose.msra.mxu0 %v75
    %83 = vmatpush.xpose.msra.mxu0 %v74
    %84 = vmatpush.xpose.msra.mxu0 %v73
    %85 = vmatpush.xpose.msra.mxu0 %v72
    %86 = vmatpush.xpose.msra.mxu0 %v71
    %87 = vmatpush.xpose.msra.mxu0 %v70
    %88 = vmatpush.xpose.msra.mxu0 %v69
    %89 = vmatpush.xpose.msra.mxu0 %v68
    %90 = vmatpush.xpose.msra.mxu0 %v67
    %91 = vmatpush.xpose.msra.mxu0 %v66
    %92 = vmatpush.xpose.msra.mxu0 %v65
    %93 = vmatpush.xpose.msra.mxu0 %v64
    %94 = vmatpush.xpose.msra.mxu0 %v63
    %95 = vmatmul.f32.gmra.mxu0 %v59
    %v96 = vpop.f32.mrf.mxu0
    %v97 = vadd.f32 0.0, %v96
    %98 = vmatmul.f32.gmra.mxu0 %v60
    %v99 = vpop.f32.mrf.mxu0
    %v100 = vadd.f32 0.0, %v99
    %101 = vdwg.mxu0
    %v102 = vadd.f32 %v61, %v97
    %v103 = vadd.f32 %v62, %v100
    %104 = vst [vmem:[#allocation2] sm:$0xff] %v102
    %105 = vst [vmem:[#allocation2 + $0x8] sm:$0xff] %v103
    %v106 = vld [vmem:[#allocation3] sm:$0xff]
    %v107 = vld [vmem:[#allocation3 + $0x8] sm:$0xff]
    %v108 = vld [vmem:[%s2] sm:$0x1]
    %v110 = vperm.slane %v108, 0
    %v112 = vmul.f32 %v59, %v110
    %v113 = vmul.f32 %v60, %v110
    %114 = vadd.xlane.f32.xlu0 %v112
    %v115 = vpop.xlane.xlu0 %114
    %116 = vadd.xlane.f32.xlu0 %v113
    %v117 = vpop.xlane.xlu0 %116
    %v118 = vadd.f32 %v106, %v115
    %v119 = vadd.f32 %v107, %v117
    %vm120 = vcmask 7168
    %121 = vst.msk [vmem:[#allocation3] sm:$0xff] %vm120, %v118
    %122 = vst.msk [vmem:[#allocation3 + $0x8] sm:$0xff] %vm120, %v119
    // Predicated region
    $region30: #{tpu_custom_call.1} parent=1 // pred_check
      %p123 = pneg %p50
    $region31: #{tpu_custom_call.1} parent=1 // pred_check_branch
      %125 = sbr.rel (%p123) target = $region33
    $region32: #{tpu_custom_call.1} parent=1 // pred_region
      %v126 = vld [vmem:[#allocation2] sm:$0xff]
      %v127 = vld [vmem:[#allocation2 + $0x8] sm:$0xff]
      %v128 = vld [vmem:[#allocation3] sm:$0xff]
      %v129 = vld [vmem:[#allocation3 + $0x8] sm:$0xff]
      %131 = vset.pattern.permute.xlu0 0
      %132 = vperm.xlu0 %131, %v128
      %v133 = vpop.permute.xlu0 %132
      %136 = vset.pattern.permute.xlu0 0
      %137 = vperm.xlu0 %136, %v129
      %v138 = vpop.permute.xlu0 %137
      %v140 = vsub.f32 %v126, %v133
      %v141 = vsub.f32 %v127, %v138
      %v142 = vld [vmem:[%s3] sm:$0x1]
      %v144 = vperm.slane %v142, 0
      %v146 = vadd.f32 %v140, %v144
      %v147 = vadd.f32 %v141, %v144
      %148 = vst [vmem:[#allocation9] sm:$0xff] %v146
      %149 = vst [vmem:[#allocation9 + $0x8] sm:$0xff] %v147
    $region33: #{tpu_custom_call.1} parent=1 // pred_fallthru
      _
    // Predicated region
    $region34: #{tpu_custom_call.1} parent=1 // pred_check
      _
    $region35: #{tpu_custom_call.1} parent=1 // pred_check_branch
      %151 = sbr.rel (0) target = $region37
    $region36: #{tpu_custom_call.1} parent=1 // pred_region
      %153 = vsyncadd [#allocation6], 0
      %s154 = sshll.u32 [#allocation9], 4
      %s155 = int_to_ptr.vmem [resolvable:$true] %s154
      %s156 = sshll.u32 %s4, 4
      %s157 = int_to_ptr.hbm [resolvable:$true] %s156
      %162 = dma.vmem_to_hbm [thread:$0]  %s155, 256, %s157, [#allocation6], 128, 128, 8
    $region37: #{tpu_custom_call.1} parent=1 // pred_fallthru
      _
    // Predicated region
    $region38: #{tpu_custom_call.1} parent=1 // pred_check
      _
    $region39: #{tpu_custom_call.1} parent=1 // pred_check_branch
      %164 = sbr.rel (0) target = $region41
    $region40: #{tpu_custom_call.1} parent=1 // pred_region
      %166 = dma.done [#allocation6], 256
    $region41: #{tpu_custom_call.1} parent=1 // pred_fallthru
      _
    %167 = vsyncpa [#allocation5], 1
    %168 = vsyncpa [#allocation8], 1
    %169 = vsyncpa [#allocation6], 1

</llo_original>
